<compile_context>
chip_gen: v5e
topology: v5e:2x2
jax: 0.10.0
libtpu: 0.0.40
codegen_flags: <defaults>
</compile_context>

<pallas_src>
import jax
import jax.numpy as jnp
from jax.experimental import pallas as pl
from jax.experimental.pallas import tpu as pltpu

# ---- problem sizes (match the PyTorch module) --------------------------------
N, C_IN, H, W = 2, 3, 16, 16
C_OUT, KH, KW = 6, 3, 3
OH, OW = H - KH + 1, W - KW + 1          # stride 1, padding 0 -> 14 x 14
HW = H * W                               # 256 lanes per image
NHW = N * HW                             # 512 lanes, batch merged
CPAD = 8                                 # channels padded to one sublane tile
KSIZE = KH * KW * CPAD                   # 72 (aligned im2col contraction axis)


def conv2d_kernel(x_ref, w_ref, o_ref):
    """Single invocation (no grid).

    x_ref: (N, C_IN, H*W)   VMEM  — spatial on lanes (256 wide per image)
    w_ref: (C_OUT, 72)      VMEM  — pre-flattened (kw, kh, c_pad8) weights,
                                    bias folded into column (0, 0, 3)
    o_ref: (N, C_OUT, H*W)  VMEM  — lane-dense output (256 wide per image)
    """
    w = w_ref[...]                                               # (6, 72)

    # Merge the batch along the lane axis: (C_IN, N*HW) = (3, 512).
    xm = jnp.concatenate([x_ref[n] for n in range(N)], axis=1)

    # Pad channels to a full 8-sublane tile: row 3 is the constant-1 bias row
    # (bias lives in the weight slab), rows 4..7 are zero (weights there are 0).
    ones_row = jnp.ones((1, NHW), jnp.float32)
    zero_rows = jnp.zeros((CPAD - C_IN - 1, NHW), jnp.float32)
    xp = jnp.concatenate([xm, ones_row, zero_rows], axis=0)      # (8, 512)

    # kh taps: lane rotations of the whole padded tile (XLU, off the VALU path).
    # np.roll semantics: shift = NHW - s  <=>  out[m] = x[m + s]; valid output
    # columns never wrap across an image boundary (max p + s = 255 < 256), and
    # the wrapped/garbage columns are cropped by the consumer.
    b0 = xp
    b1 = pltpu.roll(xp, shift=NHW - W, axis=1)
    b2 = pltpu.roll(xp, shift=NHW - 2 * W, axis=1)
    kh_block = jnp.concatenate([b0, b1, b2], axis=0)             # (24, 512)

    # kw taps: roll the whole 24-row block by 1 and 2 (2 rolls replace 6).
    kw1 = pltpu.roll(kh_block, shift=NHW - 1, axis=1)
    kw2 = pltpu.roll(kh_block, shift=NHW - 2, axis=1)
    patches = jnp.concatenate([kh_block, kw1, kw2], axis=0)      # (72, 512)

    # One MXU matmul for the whole batch, bias folded in: (6,72) x (72,512).
    acc = jnp.dot(w, patches, preferred_element_type=jnp.float32)  # (6, 512)

    # Lane-dense stores: one 256-wide slab per image.
    for n in range(N):
        o_ref[n] = acc[:, n * HW:(n + 1) * HW].astype(o_ref.dtype)


def prepare_conv_params(weight_oihw, bias):
    """One-time (init-time) parameter prep: OIHW weights + bias -> (6, 72) slab.

    Row layout of the contraction axis is (kw, kh, c_pad8), matching the
    in-kernel patch matrix.  Pad channels 3..7 are zero except (kw=0, kh=0,
    c=3), which carries the bias (multiplied by the constant-1 activation row).
    """
    w_perm = jnp.transpose(weight_oihw, (0, 3, 2, 1))            # (C_OUT, KW, KH, C_IN)
    w_pad = jnp.pad(w_perm, ((0, 0), (0, 0), (0, 0), (0, CPAD - C_IN)))
    w_pad = w_pad.at[:, 0, 0, C_IN].set(bias)                    # fold bias
    return w_pad.reshape(C_OUT, KW * KH * CPAD).astype(jnp.float32)   # (6, 72)


@jax.jit
def conv2d_pallas(x_nchw, w72):
    """PyTorch-style Conv2d forward.

    x_nchw: (N, C_IN, H, W) float32
    w72:    (C_OUT, 72)     float32  — from prepare_conv_params (static)
    returns (N, C_OUT, OH, OW) float32
    """
    x_flat = x_nchw.reshape(N, C_IN, HW)                         # free reshape

    out_flat = pl.pallas_call(
        conv2d_kernel,
        out_shape=jax.ShapeDtypeStruct((N, C_OUT, HW), jnp.float32),
        in_specs=[
            pl.BlockSpec(memory_space=pltpu.MemorySpace.VMEM),
            pl.BlockSpec(memory_space=pltpu.MemorySpace.VMEM),
        ],
        out_specs=pl.BlockSpec(memory_space=pltpu.MemorySpace.VMEM),
    )(x_flat, w72)

    # Crop the valid (OH, OW) window back to NCHW.  Kept only to match the
    # Conv2d output contract; a fused downstream consumer should index
    # `out_flat` directly instead of materializing this copy.
    return out_flat.reshape(N, C_OUT, H, W)[:, :, :OH, :OW]


if __name__ == "__main__":
    key = jax.random.PRNGKey(0)
    kx, kw_, kb = jax.random.split(key, 3)

    # Deterministic parameter init (PyTorch-ish uniform bound = 1/sqrt(fan_in)).
    fan_in = C_IN * KH * KW
    bound = 1.0 / (fan_in ** 0.5)
    weight = jax.random.uniform(kw_, (C_OUT, C_IN, KH, KW),
                                minval=-bound, maxval=bound, dtype=jnp.float32)
    bias = jax.random.uniform(kb, (C_OUT,), minval=-bound, maxval=bound,
                              dtype=jnp.float32)
    x = jax.random.normal(kx, (N, C_IN, H, W), dtype=jnp.float32)

    # Hoisted out of the per-call path: done once at parameter-init time.
    w72 = prepare_conv_params(weight, bias)

    out = conv2d_pallas(x, w72)
    out = jax.block_until_ready(out)

    # Silent correctness check against XLA's conv (covers the roll sign
    # convention, the aligned K=72 zero-padding and the bias fold).
    ref = jax.lax.conv_general_dilated(
        x, weight, window_strides=(1, 1), padding="VALID",
        dimension_numbers=("NCHW", "OIHW", "NCHW")) + bias[None, :, None, None]
    assert out.shape == (N, C_OUT, OH, OW)
    assert jnp.allclose(out, ref, atol=1e-4, rtol=1e-4)

    print("KERNEL_OK")
</pallas_src>

<mosaic_0001>
module attributes {stable_mosaic.version = 11 : i64} {
  func.func @conv2d_kernel(%arg0: memref<2x3x256xf32, #tpu.memory_space<vmem>>, %arg1: memref<6x72xf32, #tpu.memory_space<vmem>>, %arg2: memref<2x6x256xf32, #tpu.memory_space<vmem>>) attributes {dimension_semantics = [], scalar_prefetch = 0 : i64, scratch_operands = 0 : i64, tpu.core_type = #tpu.core_type<tc>} {
    %c0 = arith.constant 0 : index
    %c0_0 = arith.constant 0 : index
    %0 = vector.load %arg1[%c0, %c0_0] : memref<6x72xf32, #tpu.memory_space<vmem>>, vector<6x72xf32>
    %c0_1 = arith.constant 0 : index
    %c0_2 = arith.constant 0 : index
    %c0_3 = arith.constant 0 : index
    %1 = vector.load %arg0[%c0_1, %c0_2, %c0_3] : memref<2x3x256xf32, #tpu.memory_space<vmem>>, vector<1x3x256xf32>
    %2 = vector.shape_cast %1 : vector<1x3x256xf32> to vector<3x256xf32>
    %c1 = arith.constant 1 : index
    %c0_4 = arith.constant 0 : index
    %c0_5 = arith.constant 0 : index
    %3 = vector.load %arg0[%c1, %c0_4, %c0_5] : memref<2x3x256xf32, #tpu.memory_space<vmem>>, vector<1x3x256xf32>
    %4 = vector.shape_cast %3 : vector<1x3x256xf32> to vector<3x256xf32>
    %5 = tpu.concatenate %2, %4 in 1 : vector<3x256xf32>, vector<3x256xf32> -> vector<3x512xf32>
    %cst = arith.constant 1.000000e+00 : f32
    %6 = vector.broadcast %cst : f32 to vector<1x512xf32>
    %cst_6 = arith.constant 0.000000e+00 : f32
    %7 = vector.broadcast %cst_6 : f32 to vector<4x512xf32>
    %8 = tpu.concatenate %5, %6, %7 in 0 : vector<3x512xf32>, vector<1x512xf32>, vector<4x512xf32> -> vector<8x512xf32>
    %c496_i32 = arith.constant 496 : i32
    %9 = tpu.dynamic_rotate %8 by %c496_i32 dim 1 : vector<8x512xf32>, i32 -> vector<8x512xf32>
    %c480_i32 = arith.constant 480 : i32
    %10 = tpu.dynamic_rotate %8 by %c480_i32 dim 1 : vector<8x512xf32>, i32 -> vector<8x512xf32>
    %11 = tpu.concatenate %8, %9, %10 in 0 : vector<8x512xf32>, vector<8x512xf32>, vector<8x512xf32> -> vector<24x512xf32>
    %c511_i32 = arith.constant 511 : i32
    %12 = tpu.dynamic_rotate %11 by %c511_i32 dim 1 : vector<24x512xf32>, i32 -> vector<24x512xf32>
    %c510_i32 = arith.constant 510 : i32
    %13 = tpu.dynamic_rotate %11 by %c510_i32 dim 1 : vector<24x512xf32>, i32 -> vector<24x512xf32>
    %14 = tpu.concatenate %11, %12, %13 in 0 : vector<24x512xf32>, vector<24x512xf32>, vector<24x512xf32> -> vector<72x512xf32>
    %cst_7 = arith.constant dense<0.000000e+00> : vector<6x512xf32>
    %15 = tpu.matmul %0, %14, %cst_7 {dimension_numbers = #tpu.dot_dimension_numbers<[1], [0], [0], [1], [0, 0, 1, 1], [], []>} : vector<6x72xf32>, vector<72x512xf32>, vector<6x512xf32> -> vector<6x512xf32>
    %16 = vector.extract_strided_slice %15 {offsets = [0, 0], sizes = [6, 256], strides = [1, 1]} : vector<6x512xf32> to vector<6x256xf32>
    %c0_8 = arith.constant 0 : index
    %c0_9 = arith.constant 0 : index
    %c0_10 = arith.constant 0 : index
    %17 = vector.load %arg2[%c0_8, %c0_9, %c0_10] : memref<2x6x256xf32, #tpu.memory_space<vmem>>, vector<1x6x256xf32>
    %18 = vector.shape_cast %17 : vector<1x6x256xf32> to vector<6x256xf32>
    %19 = vector.shape_cast %16 : vector<6x256xf32> to vector<1x6x256xf32>
    tpu.vector_store %arg2[%c0_8, %c0_9, %c0_10], %19 {strides = array<i32>} : memref<2x6x256xf32, #tpu.memory_space<vmem>>, vector<1x6x256xf32>,
    %20 = vector.extract_strided_slice %15 {offsets = [0, 256], sizes = [6, 256], strides = [1, 1]} : vector<6x512xf32> to vector<6x256xf32>
    %c1_11 = arith.constant 1 : index
    %c0_12 = arith.constant 0 : index
    %c0_13 = arith.constant 0 : index
    %21 = vector.load %arg2[%c1_11, %c0_12, %c0_13] : memref<2x6x256xf32, #tpu.memory_space<vmem>>, vector<1x6x256xf32>
    %22 = vector.shape_cast %21 : vector<1x6x256xf32> to vector<6x256xf32>
    %23 = vector.shape_cast %20 : vector<6x256xf32> to vector<1x6x256xf32>
    tpu.vector_store %arg2[%c1_11, %c0_12, %c0_13], %23 {strides = array<i32>} : memref<2x6x256xf32, #tpu.memory_space<vmem>>, vector<1x6x256xf32>,
    return
  }
}

</mosaic_0001>

<llo_original>
// kernel: conv2d_pallas.1
$region0: #{conv2d_pallas.1}
  #allocation0 [shape = 'u32[]', space=smem, size = 0x4, offset = 0x4, fixed_abs, tag = 'smem constant byte address 0x4 - core index']
  #allocation1 [shape = 'u32[72,128]{1,0:T(1,128)}', space=vmem, size = 0x9000, scoped, tag = 'internal scratch']
  %s0 = inlined_call_operand.vmem [shape: f32[2,3,256], index: 0, kind: input, shape index: {}]
  %s1 = inlined_call_operand.vmem [shape: f32[6,72], index: 1, kind: input, shape index: {}]
  %s2 = inlined_call_operand.vmem [shape: f32[2,6,256], index: 2, kind: output, shape index: {}]
  %s3 = sld [smem:[#allocation0]]
  $region18: #{conv2d_pallas.1} parent=0
    _
  %s5 = ssub.s32 1, %s3
  %s6 = scalar_select 0, %s5, %s3
  // Predicated region
  $region2: #{conv2d_pallas.1} parent=0 // pred_check
    _
  $region3: #{conv2d_pallas.1} parent=0 // pred_check_branch
    %8 = sbr.rel (0) target = $region5
  $region4: #{conv2d_pallas.1} parent=0 // pred_region
    _
  $region5: #{conv2d_pallas.1} parent=0 // pred_fallthru
    _
  // Predicated region
  $region6: #{conv2d_pallas.1} parent=0 // pred_check
    _
  $region7: #{conv2d_pallas.1} parent=0 // pred_check_branch
    %10 = sbr.rel (0) target = $region9
  $region8: #{conv2d_pallas.1} parent=0 // pred_region
    _
  $region9: #{conv2d_pallas.1} parent=0 // pred_fallthru
    _
  %v11 = vld [vmem:[%s1] sm:$0x3f]
  %v12 = vld [vmem:[%s0] sm:$0x77]
  %s13 = scalar_lea.vmem %s0, 8
  %v14 = vld [vmem:[%s13] sm:$0x77]
  %16 = vst [vmem:[#allocation1] ss:$2 sm:$0xff] %v12
  %v17 = vld.sshfl [vmem:[#allocation1] sm:$0xff pattern:$0x75316420]
  %v18 = vld.sshfl [vmem:[#allocation1 + $0x8] sm:$0xff pattern:$0x75316420]
  %22 = vst [vmem:[#allocation1] ss:$2 sm:$0xff] %v14
  %v23 = vld.sshfl [vmem:[#allocation1] sm:$0xff pattern:$0x75316420]
  %v24 = vld.sshfl [vmem:[#allocation1 + $0x8] sm:$0xff pattern:$0x75316420]
  %vm27 = vcmask 1042432
  %v28 = vsel %vm27, %v17, 1.0
  %v29 = vsel %vm27, %v18, 1.0
  %v30 = vsel %vm27, %v23, 1.0
  %v31 = vsel %vm27, %v24, 1.0
  %vm32 = vcmask 1043456
  %v33 = vsel %vm32, %v28, 0.0
  %v34 = vsel %vm32, %v29, 0.0
  %v35 = vsel %vm32, %v30, 0.0
  %v36 = vsel %vm32, %v31, 0.0
  %37 = vrot.lane.b32.xlu0 %v33, 112
  %v38 = vpop.permute.xlu0 %37
  %39 = vrot.lane.b32.xlu0 %v34, 112
  %v40 = vpop.permute.xlu0 %39
  %41 = vrot.lane.b32.xlu0 %v35, 112
  %v42 = vpop.permute.xlu0 %41
  %43 = vrot.lane.b32.xlu0 %v36, 112
  %v44 = vpop.permute.xlu0 %43
  %v45 = vlaneseq
  %v46 = vand.u32 %v45, 127
  %vm47 = vcmp.lt.s32.totalorder %v46, 112
  %v48 = vsel %vm47, %v42, %v44
  %v49 = vsel %vm47, %v40, %v42
  %v50 = vsel %vm47, %v38, %v40
  %v51 = vsel %vm47, %v44, %v38
  %52 = vrot.lane.b32.xlu0 %v33, 96
  %v53 = vpop.permute.xlu0 %52
  %54 = vrot.lane.b32.xlu0 %v34, 96
  %v55 = vpop.permute.xlu0 %54
  %56 = vrot.lane.b32.xlu0 %v35, 96
  %v57 = vpop.permute.xlu0 %56
  %58 = vrot.lane.b32.xlu0 %v36, 96
  %v59 = vpop.permute.xlu0 %58
  %vm60 = vcmp.lt.s32.totalorder %v46, 96
  %v61 = vsel %vm60, %v57, %v59
  %v62 = vsel %vm60, %v55, %v57
  %v63 = vsel %vm60, %v53, %v55
  %v64 = vsel %vm60, %v59, %v53
  %65 = vrot.lane.b32.xlu0 %v33, 127
  %v66 = vpop.permute.xlu0 %65
  %67 = vrot.lane.b32.xlu0 %v50, 127
  %v68 = vpop.permute.xlu0 %67
  %69 = vrot.lane.b32.xlu0 %v63, 127
  %v70 = vpop.permute.xlu0 %69
  %71 = vrot.lane.b32.xlu0 %v34, 127
  %v72 = vpop.permute.xlu0 %71
  %73 = vrot.lane.b32.xlu0 %v49, 127
  %v74 = vpop.permute.xlu0 %73
  %75 = vrot.lane.b32.xlu0 %v62, 127
  %v76 = vpop.permute.xlu0 %75
  %77 = vrot.lane.b32.xlu0 %v35, 127
  %v78 = vpop.permute.xlu0 %77
  %79 = vrot.lane.b32.xlu0 %v48, 127
  %v80 = vpop.permute.xlu0 %79
  %81 = vrot.lane.b32.xlu0 %v61, 127
  %v82 = vpop.permute.xlu0 %81
  %83 = vrot.lane.b32.xlu0 %v36, 127
  %v84 = vpop.permute.xlu0 %83
  %85 = vrot.lane.b32.xlu0 %v51, 127
  %v86 = vpop.permute.xlu0 %85
  %87 = vrot.lane.b32.xlu0 %v64, 127
  %v88 = vpop.permute.xlu0 %87
  %vm89 = vcmp.lt.s32.totalorder %v46, 127
  %v90 = vsel %vm89, %v78, %v84
  %v91 = vsel %vm89, %v80, %v86
  %v92 = vsel %vm89, %v82, %v88
  %v93 = vsel %vm89, %v72, %v78
  %v94 = vsel %vm89, %v74, %v80
  %v95 = vsel %vm89, %v76, %v82
  %v96 = vsel %vm89, %v66, %v72
  %v97 = vsel %vm89, %v68, %v74
  %v98 = vsel %vm89, %v70, %v76
  %v99 = vsel %vm89, %v84, %v66
  %v100 = vsel %vm89, %v86, %v68
  %v101 = vsel %vm89, %v88, %v70
  %102 = vrot.lane.b32.xlu0 %v33, 126
  %v103 = vpop.permute.xlu0 %102
  %104 = vrot.lane.b32.xlu0 %v50, 126
  %v105 = vpop.permute.xlu0 %104
  %106 = vrot.lane.b32.xlu0 %v63, 126
  %v107 = vpop.permute.xlu0 %106
  %108 = vrot.lane.b32.xlu0 %v34, 126
  %v109 = vpop.permute.xlu0 %108
  %110 = vrot.lane.b32.xlu0 %v49, 126
  %v111 = vpop.permute.xlu0 %110
  %112 = vrot.lane.b32.xlu0 %v62, 126
  %v113 = vpop.permute.xlu0 %112
  %114 = vrot.lane.b32.xlu0 %v35, 126
  %v115 = vpop.permute.xlu0 %114
  %116 = vrot.lane.b32.xlu0 %v48, 126
  %v117 = vpop.permute.xlu0 %116
  %118 = vrot.lane.b32.xlu0 %v61, 126
  %v119 = vpop.permute.xlu0 %118
  %120 = vrot.lane.b32.xlu0 %v36, 126
  %v121 = vpop.permute.xlu0 %120
  %122 = vrot.lane.b32.xlu0 %v51, 126
  %v123 = vpop.permute.xlu0 %122
  %124 = vrot.lane.b32.xlu0 %v64, 126
  %v125 = vpop.permute.xlu0 %124
  %vm126 = vcmp.lt.s32.totalorder %v46, 126
  %v127 = vsel %vm126, %v115, %v121
  %v128 = vsel %vm126, %v117, %v123
  %v129 = vsel %vm126, %v119, %v125
  %v130 = vsel %vm126, %v109, %v115
  %v131 = vsel %vm126, %v111, %v117
  %v132 = vsel %vm126, %v113, %v119
  %v133 = vsel %vm126, %v103, %v109
  %v134 = vsel %vm126, %v105, %v111
  %v135 = vsel %vm126, %v107, %v113
  %v136 = vsel %vm126, %v121, %v103
  %v137 = vsel %vm126, %v123, %v105
  %v138 = vsel %vm126, %v125, %v107
  %vm139 = vcmask 588800
  %v141 = vsel %vm139, %v11, 0
  %143 = vmatpush.msra.mxu0 0.0
  %144 = vmatpush.msra.mxu0 0.0
  %145 = vmatpush.msra.mxu0 0.0
  %146 = vmatpush.msra.mxu0 0.0
  %147 = vmatpush.msra.mxu0 0.0
  %148 = vmatpush.msra.mxu0 0.0
  %149 = vmatpush.msra.mxu0 0.0
  %150 = vmatpush.msra.mxu0 %v135
  %151 = vmatpush.msra.mxu0 %v134
  %152 = vmatpush.msra.mxu0 %v133
  %153 = vmatpush.msra.mxu0 %v98
  %154 = vmatpush.msra.mxu0 %v97
  %155 = vmatpush.msra.mxu0 %v96
  %156 = vmatpush.msra.mxu0 %v63
  %157 = vmatpush.msra.mxu0 %v50
  %158 = vmatpush.msra.mxu0 %v33
  %159 = vmatmul.f32.gmra.mxu0 %v141
  %v160 = vpop.f32.mrf.mxu0
  %v161 = vadd.f32 0.0, %v160
  %162 = vdwg.mxu0
  %163 = vmatpush.msra.mxu0 0.0
  %164 = vmatpush.msra.mxu0 0.0
  %165 = vmatpush.msra.mxu0 0.0
  %166 = vmatpush.msra.mxu0 0.0
  %167 = vmatpush.msra.mxu0 0.0
  %168 = vmatpush.msra.mxu0 0.0
  %169 = vmatpush.msra.mxu0 0.0
  %170 = vmatpush.msra.mxu0 %v132
  %171 = vmatpush.msra.mxu0 %v131
  %172 = vmatpush.msra.mxu0 %v130
  %173 = vmatpush.msra.mxu0 %v95
  %174 = vmatpush.msra.mxu0 %v94
  %175 = vmatpush.msra.mxu0 %v93
  %176 = vmatpush.msra.mxu0 %v62
  %177 = vmatpush.msra.mxu0 %v49
  %178 = vmatpush.msra.mxu0 %v34
  %179 = vmatmul.f32.gmra.mxu0 %v141
  %v180 = vpop.f32.mrf.mxu0
  %v181 = vadd.f32 0.0, %v180
  %182 = vdwg.mxu0
  %183 = vmatpush.msra.mxu0 0.0
  %184 = vmatpush.msra.mxu0 0.0
  %185 = vmatpush.msra.mxu0 0.0
  %186 = vmatpush.msra.mxu0 0.0
  %187 = vmatpush.msra.mxu0 0.0
  %188 = vmatpush.msra.mxu0 0.0
  %189 = vmatpush.msra.mxu0 0.0
  %190 = vmatpush.msra.mxu0 %v129
  %191 = vmatpush.msra.mxu0 %v128
  %192 = vmatpush.msra.mxu0 %v127
  %193 = vmatpush.msra.mxu0 %v92
  %194 = vmatpush.msra.mxu0 %v91
  %195 = vmatpush.msra.mxu0 %v90
  %196 = vmatpush.msra.mxu0 %v61
  %197 = vmatpush.msra.mxu0 %v48
  %198 = vmatpush.msra.mxu0 %v35
  %199 = vmatmul.f32.gmra.mxu0 %v141
  %v200 = vpop.f32.mrf.mxu0
  %v201 = vadd.f32 0.0, %v200
  %202 = vdwg.mxu0
  %203 = vmatpush.msra.mxu0 0.0
  %204 = vmatpush.msra.mxu0 0.0
  %205 = vmatpush.msra.mxu0 0.0
  %206 = vmatpush.msra.mxu0 0.0
  %207 = vmatpush.msra.mxu0 0.0
  %208 = vmatpush.msra.mxu0 0.0
  %209 = vmatpush.msra.mxu0 0.0
  %210 = vmatpush.msra.mxu0 %v138
  %211 = vmatpush.msra.mxu0 %v137
  %212 = vmatpush.msra.mxu0 %v136
  %213 = vmatpush.msra.mxu0 %v101
  %214 = vmatpush.msra.mxu0 %v100
  %215 = vmatpush.msra.mxu0 %v99
  %216 = vmatpush.msra.mxu0 %v64
  %217 = vmatpush.msra.mxu0 %v51
  %218 = vmatpush.msra.mxu0 %v36
  %219 = vmatmul.f32.gmra.mxu0 %v141
  %v220 = vpop.f32.mrf.mxu0
  %v221 = vadd.f32 0.0, %v220
  %222 = vdwg.mxu0
  %223 = vst [vmem:[%s2] sm:$0x3f] %v161
  %224 = vst [vmem:[%s2 + $0x8] sm:$0x3f] %v181
  %s225 = scalar_lea.vmem %s2, 16
  %226 = vst [vmem:[%s225] sm:$0x3f] %v201
  %227 = vst [vmem:[%s225 + $0x8] sm:$0x3f] %v221
  // Predicated region
  $region10: #{conv2d_pallas.1} parent=0 // pred_check
    _
  $region11: #{conv2d_pallas.1} parent=0 // pred_check_branch
    %229 = sbr.rel (0) target = $region13
  $region12: #{conv2d_pallas.1} parent=0 // pred_region
    _
  $region13: #{conv2d_pallas.1} parent=0 // pred_fallthru
    _
  // Predicated region
  $region14: #{conv2d_pallas.1} parent=0 // pred_check
    _
  $region15: #{conv2d_pallas.1} parent=0 // pred_check_branch
    %231 = sbr.rel (0) target = $region17
  $region16: #{conv2d_pallas.1} parent=0 // pred_region
    _
  $region17: #{conv2d_pallas.1} parent=0 // pred_fallthru
    _

</llo_original>
